<compile_context>
chip_gen: v6e
topology: v6e:2x2x1
jax: 0.10.0
libtpu: 0.0.40
codegen_flags: <defaults>
</compile_context>

<pallas_src>
import jax
import jax.numpy as jnp
from jax.experimental import pallas as pl
from jax.experimental.pallas import tpu as pltpu


def _logreg_kernel(params_ref, x_ref, o_ref):
    # params_ref: SMEM (3,) f32 = [-w0, -w1, -b]
    # x_ref:      VMEM (2, R, 128) f32 -- batch dense on sublanes AND lanes
    # o_ref:      VMEM (R, 128) f32
    nw0 = params_ref[0]
    nw1 = params_ref[1]
    nb = params_ref[2]
    x0 = x_ref[0]                      # (R, 128)
    x1 = x_ref[1]                      # (R, 128)
    zneg = x0 * nw0 + x1 * nw1 + nb    # VPU: = -(x @ w.T + b)
    e = jnp.exp(zneg)                  # EUP
    o_ref[...] = (1.0 / (1.0 + e)).astype(o_ref.dtype)  # exact sigmoid


def _round_up(n, m):
    return ((n + m - 1) // m) * m


def logistic_regression(x, w, b, *, tb=512 * 1024):
    """sigmoid(x @ w.T + b).  x: (B, 2) f32, w: (1, 2) f32, b: (1,) f32 -> (B, 1) f32."""
    B, in_f = x.shape
    assert in_f == 2 and w.shape == (1, 2) and b.shape == (1,)
    x = x.astype(jnp.float32)

    # Batch dense on lanes (128) and sublanes (rows).
    # TODO(synk): upstream producers should emit features-major (2, B) directly so the
    # transpose below fuses away instead of materializing an HBM->HBM copy.
    B_pad = _round_up(B, 128)
    rows = B_pad // 128
    xt = x.T                                           # (2, B)
    if B_pad != B:
        xt = jnp.pad(xt, ((0, 0), (0, B_pad - B)))     # pad to a whole 128-lane row
    x3 = xt.reshape(2, rows, 128)                      # pure reshape, no data movement

    # Rows per grid step: multiple of 8 sublanes (or the whole array if smaller).
    # Default tb=512K elems -> R=4096 rows -> ~12 MiB double-buffered VMEM (v5e-safe).
    r_req = max(8, _round_up(max(tb // 128, 1), 8))
    R = rows if rows <= r_req else r_req
    grid = pl.cdiv(rows, R)

    # Negated params: kernel computes exp(-z) with no extra VALU negate.
    params = -jnp.concatenate([w.reshape(-1), b.reshape(-1)]).astype(jnp.float32)

    out = pl.pallas_call(
        _logreg_kernel,
        out_shape=jax.ShapeDtypeStruct((rows, 128), jnp.float32),
        grid_spec=pltpu.PrefetchScalarGridSpec(
            num_scalar_prefetch=0,
            grid=(grid,),
            in_specs=[
                pl.BlockSpec(memory_space=pltpu.MemorySpace.SMEM),   # params (3,)
                pl.BlockSpec((2, R, 128), lambda i: (0, i, 0)),      # x, dense tiles
            ],
            out_specs=pl.BlockSpec((R, 128), lambda i: (i, 0)),
        ),
        compiler_params=pltpu.CompilerParams(
            dimension_semantics=("parallel",),   # independent batch tiles
        ),
    )(params, x3)

    return out.reshape(-1)[:B].reshape(B, 1)


if __name__ == "__main__":
    key = jax.random.PRNGKey(0)
    kx, kw, kb = jax.random.split(key, 3)

    B, IN, OUT = 8, 2, 1
    x = jax.random.normal(kx, (B, IN), dtype=jnp.float32)

    # Same fan-in-uniform init scheme as torch.nn.Linear, deterministic.
    bound = 1.0 / jnp.sqrt(jnp.float32(IN))
    w = jax.random.uniform(kw, (OUT, IN), dtype=jnp.float32, minval=-bound, maxval=bound)
    b = jax.random.uniform(kb, (OUT,), dtype=jnp.float32, minval=-bound, maxval=bound)

    # Elementwise f32 reference (avoids MXU default-precision noise in the check).
    def ref_fn(xi):
        return jax.nn.sigmoid(xi[:, 0:1] * w[0, 0] + xi[:, 1:2] * w[0, 1] + b[0])

    out = jax.block_until_ready(logistic_regression(x, w, b))
    assert out.shape == (B, OUT)
    assert jnp.allclose(out, ref_fn(x), atol=1e-5, rtol=1e-5)

    # Tiled path: grid > 1, partial last sublane block, non-multiple-of-128 batch.
    B2 = 2500
    x2 = jax.random.normal(kx, (B2, IN), dtype=jnp.float32)
    out2 = jax.block_until_ready(logistic_regression(x2, w, b, tb=1024))
    assert out2.shape == (B2, OUT)
    assert jnp.allclose(out2, ref_fn(x2), atol=1e-5, rtol=1e-5)

    print("KERNEL_OK")
</pallas_src>

<mosaic_0001>
module attributes {stable_mosaic.version = 11 : i64} {
  func.func @_logreg_kernel(%arg0: i32, %arg1: memref<3xf32, #tpu.memory_space<smem>>, %arg2: memref<2x1x128xf32, #tpu.memory_space<vmem>>, %arg3: memref<1x128xf32, #tpu.memory_space<vmem>>) attributes {dimension_semantics = [#tpu.dimension_semantics<parallel>], iteration_bounds = array<i64: 1>, scalar_prefetch = 0 : i64, scratch_operands = 0 : i64, tpu.core_type = #tpu.core_type<tc>, window_params = [{transform_indices = @transform_0, window_bounds = array<i64: 3>}, {transform_indices = @transform_1, window_bounds = array<i64: 2, 1, 128>}, {transform_indices = @transform_2, window_bounds = array<i64: 1, 128>}]} {
    %c0 = arith.constant 0 : index
    %0 = memref.load %arg1[%c0] : memref<3xf32, #tpu.memory_space<smem>>
    %c1 = arith.constant 1 : index
    %1 = memref.load %arg1[%c1] : memref<3xf32, #tpu.memory_space<smem>>
    %c2 = arith.constant 2 : index
    %2 = memref.load %arg1[%c2] : memref<3xf32, #tpu.memory_space<smem>>
    %c0_0 = arith.constant 0 : index
    %c0_1 = arith.constant 0 : index
    %c0_2 = arith.constant 0 : index
    %3 = vector.load %arg2[%c0_0, %c0_1, %c0_2] : memref<2x1x128xf32, #tpu.memory_space<vmem>>, vector<1x1x128xf32>
    %4 = vector.shape_cast %3 : vector<1x1x128xf32> to vector<1x128xf32>
    %c1_3 = arith.constant 1 : index
    %c0_4 = arith.constant 0 : index
    %c0_5 = arith.constant 0 : index
    %5 = vector.load %arg2[%c1_3, %c0_4, %c0_5] : memref<2x1x128xf32, #tpu.memory_space<vmem>>, vector<1x1x128xf32>
    %6 = vector.shape_cast %5 : vector<1x1x128xf32> to vector<1x128xf32>
    %7 = vector.broadcast %0 : f32 to vector<1x128xf32>
    %8 = arith.mulf %4, %7 : vector<1x128xf32>
    %9 = vector.broadcast %1 : f32 to vector<1x128xf32>
    %10 = arith.mulf %6, %9 : vector<1x128xf32>
    %11 = arith.addf %8, %10 : vector<1x128xf32>
    %12 = vector.broadcast %2 : f32 to vector<1x128xf32>
    %13 = arith.addf %11, %12 : vector<1x128xf32>
    %14 = math.exp %13 : vector<1x128xf32>
    %cst = arith.constant 1.000000e+00 : f32
    %15 = vector.broadcast %cst : f32 to vector<1x128xf32>
    %16 = arith.addf %15, %14 : vector<1x128xf32>
    %cst_6 = arith.constant 1.000000e+00 : f32
    %17 = vector.broadcast %cst_6 : f32 to vector<1x128xf32>
    %18 = arith.divf %17, %16 : vector<1x128xf32>
    %c0_7 = arith.constant 0 : index
    %c0_8 = arith.constant 0 : index
    %19 = vector.load %arg3[%c0_7, %c0_8] : memref<1x128xf32, #tpu.memory_space<vmem>>, vector<1x128xf32>
    tpu.vector_store %arg3[%c0_7, %c0_8], %18 {strides = array<i32>} : memref<1x128xf32, #tpu.memory_space<vmem>>, vector<1x128xf32>,
    return
  }
  func.func @transform_0(%arg0: i32) -> i32 {
    %c0_i32 = arith.constant 0 : i32
    %c0_i32_0 = arith.constant 0 : i32
    return %c0_i32 : i32
  }
  func.func @transform_1(%arg0: i32) -> (i32, i32, i32) {
    %c0_i32 = arith.constant 0 : i32
    %c0_i32_0 = arith.constant 0 : i32
    %c0_i32_1 = arith.constant 0 : i32
    return %c0_i32, %arg0, %c0_i32_0 : i32, i32, i32
  }
  func.func @transform_2(%arg0: i32) -> (i32, i32) {
    %c0_i32 = arith.constant 0 : i32
    %c0_i32_0 = arith.constant 0 : i32
    return %arg0, %c0_i32 : i32, i32
  }
}

</mosaic_0001>

<llo_original>
// kernel: tpu_custom_call.1
$region0: #{tpu_custom_call.1}
  #allocation0 [shape = 'u32[]', space=smem, size = 0x4, offset = 0x4, fixed_abs, tag = 'smem constant byte address 0x4 - core index']
  #allocation1 [shape = 'u32[144,128]{1,0:T(1,128)}', space=vmem, size = 0x12000, scoped, tag = 'internal scratch']
  %s0 = inlined_call_operand.hbm [shape: f32[3], index: 0, kind: input, shape index: {}]
  %s1 = inlined_call_operand.hbm [shape: f32[2,1,128], index: 1, kind: input, shape index: {}]
  %s2 = inlined_call_operand.hbm [shape: f32[1,128], index: 2, kind: output, shape index: {}]
  %s3 = sld [smem:[#allocation0]]
  $region26: #{tpu_custom_call.1} parent=0
    _
  %s5 = ssub.s32 1, %s3
  %s6 = scalar_select 0, %s5, %s3
  $region1: #{tpu_custom_call.1} parent=0
    #allocation2 [shape = 'u8[512]{0}', space=smem, size = 0x200, scoped, tag = 'input window, operand 0, single buffered']
    #allocation3 [shape = 's32[1]{0}', space=sflag, size = 0x4, scoped, tag = 'scoped memory for tpu_custom_call.1']
    #allocation4 [shape = 's32[1]{0}', space=sflag, size = 0x4, scoped, tag = 'scoped memory for tpu_custom_call.1']
    #allocation5 [shape = 's32[1]{0}', space=sflag, size = 0x4, scoped, tag = 'scoped memory for tpu_custom_call.1']
    #allocation6 [shape = 'u8[1024]{0}', space=vmem, size = 0x400, scoped, tag = 'input window, operand 1, single buffered']
    #allocation7 [shape = 'u8[512]{0}', space=vmem, size = 0x400, scoped, tag = 'output window, operand 0, single buffered']
    %7 = vsyncpa [#allocation5], 0
    %8 = vsyncpa [#allocation3], 0
    %9 = vsyncpa [#allocation4], 0
    // Predicated region
    $region2: #{tpu_custom_call.1} parent=1 // pred_check
      _
    $region3: #{tpu_custom_call.1} parent=1 // pred_check_branch
      %11 = sbr.rel (0) target = $region5
    $region4: #{tpu_custom_call.1} parent=1 // pred_region
      %s13 = ssub.s32 16, 16
      %14 = vsyncadd [#allocation5], %s13
      %17 = dma.hbm_to_smem %s0, 16, [#allocation2], [#allocation5]
    $region5: #{tpu_custom_call.1} parent=1 // pred_fallthru
      _
    // Predicated region
    $region6: #{tpu_custom_call.1} parent=1 // pred_check
      _
    $region7: #{tpu_custom_call.1} parent=1 // pred_check_branch
      %19 = sbr.rel (0) target = $region9
    $region8: #{tpu_custom_call.1} parent=1 // pred_region
      %s21 = ssub.s32 32, 32
      %22 = vsyncadd [#allocation3], %s21
      %s23 = sshll.u32 [#allocation6], 4
      %s24 = int_to_ptr.vmem [resolvable:$true] %s23
      %29 = dma.hbm_to_vmem [thread:$0]  %s1, 32, %s24, [#allocation3], 16, 16, 1
    $region9: #{tpu_custom_call.1} parent=1 // pred_fallthru
      _
    // Predicated region
    $region10: #{tpu_custom_call.1} parent=1 // pred_check
      _
    $region11: #{tpu_custom_call.1} parent=1 // pred_check_branch
      %31 = sbr.rel (0) target = $region13
    $region12: #{tpu_custom_call.1} parent=1 // pred_region
      %32 = dma.done [#allocation5], 16
    $region13: #{tpu_custom_call.1} parent=1 // pred_fallthru
      _
    // Predicated region
    $region14: #{tpu_custom_call.1} parent=1 // pred_check
      _
    $region15: #{tpu_custom_call.1} parent=1 // pred_check_branch
      %34 = sbr.rel (0) target = $region17
    $region16: #{tpu_custom_call.1} parent=1 // pred_region
      %35 = dma.done [#allocation3], 32
    $region17: #{tpu_custom_call.1} parent=1 // pred_fallthru
      _
    %36 = sfence
    %s37 = sld [smem:[#allocation2]]
    %s38 = sld [smem:[#allocation2 + $0x1]]
    %s39 = sld [smem:[#allocation2 + $0x2]]
    %v40 = vld [vmem:[#allocation6] sm:$0x1]
    %s41 = scalar_lea.vmem [#allocation6], 1
    %v42 = vld [vmem:[%s41] sm:$0x1]
    %v43 = vstv %s37
    %v44 = vmul.f32 %v40, %v43
    %v45 = vstv %s38
    %v46 = vmul.f32 %v42, %v45
    %v47 = vadd.f32 %v44, %v46
    %v48 = vstv %s39
    %v49 = vadd.f32 %v47, %v48
    %v50 = vmul.f32 %v49, 1.442695
    %v51 = vpow.pop %v50
    %v52 = vadd.f32 %v51, 1.0
    %v53 = vrcp.pop %v52
    %v54 = vmul.f32 1.0, %v53
    %55 = vst [vmem:[#allocation7] sm:$0x1] %v54
    // Predicated region
    $region18: #{tpu_custom_call.1} parent=1 // pred_check
      _
    $region19: #{tpu_custom_call.1} parent=1 // pred_check_branch
      %57 = sbr.rel (0) target = $region21
    $region20: #{tpu_custom_call.1} parent=1 // pred_region
      %s59 = ssub.s32 16, 16
      %60 = vsyncadd [#allocation4], %s59
      %s62 = sshll.u32 [#allocation7], 4
      %s63 = int_to_ptr.vmem [resolvable:$true] %s62
      %65 = dma.vmem_to_hbm [thread:$0]  %s63, 16, %s2, [#allocation4]
    $region21: #{tpu_custom_call.1} parent=1 // pred_fallthru
      _
    // Predicated region
    $region22: #{tpu_custom_call.1} parent=1 // pred_check
      _
    $region23: #{tpu_custom_call.1} parent=1 // pred_check_branch
      %67 = sbr.rel (0) target = $region25
    $region24: #{tpu_custom_call.1} parent=1 // pred_region
      %68 = dma.done [#allocation4], 16
    $region25: #{tpu_custom_call.1} parent=1 // pred_fallthru
      _
    %69 = vsyncpa [#allocation3], 1
    %70 = vsyncpa [#allocation4], 1
    %71 = vsyncpa [#allocation5], 1

</llo_original>
